<compile_context>
chip_gen: v7x
topology: tpu7x:2x2x1
jax: 0.10.0
libtpu: 0.0.40
codegen_flags: <defaults>
</compile_context>

<pallas_src>
import functools

import jax
import jax.numpy as jnp
from jax.experimental import pallas as pl
from jax.experimental.pallas import tpu as pltpu

_TILE_B_CAP = 2048                       # rows per grid step
_TILE_B_ALIGN = 16                       # bf16 sublane packing
_DEFAULT_SCOPED_VMEM = 32 * 1024 * 1024  # default Mosaic scoped VMEM limit


def _round_up(x, m):
    return ((x + m - 1) // m) * m


@functools.lru_cache(maxsize=1)
def _num_tensorcores_per_chip():
    """2 on dual-TensorCore v7x; 1 on v5e / v6e."""
    try:
        kind = jax.devices()[0].device_kind.lower()
    except Exception:
        return 1
    return 2 if "v7" in kind else 1


def _choose_tiling(batch, n_tc):
    """Return (tile_b, padded_batch).

    v5e/v6e (1 TC): as few serial grid steps as possible (each step costs
    ~0.35 us).  v7x (2 TC): an even number of equal-size steps so both
    TensorCores process the same number of rows.
    """
    if n_tc > 1 and batch > 128:
        steps = n_tc * pl.cdiv(pl.cdiv(batch, n_tc), _TILE_B_CAP)
    else:
        steps = pl.cdiv(batch, _TILE_B_CAP)
    tile_b = _round_up(pl.cdiv(batch, steps), _TILE_B_ALIGN)
    return tile_b, steps * tile_b


def _vmem_bytes_estimate(tile_b, state_dim, n_out):
    """Upper bound: double-buffered x/out tiles, 2x-buffered bf16 weights +
    f32 biases, plus f32 activation slabs."""
    x_tile = tile_b * state_dim * 2
    out_tile = tile_b * n_out * 4
    w_bytes = (state_dim * 256 + 256 * 256 + 256 * 128 + 128 * n_out) * 2
    b_bytes = (256 + 256 + 128 + n_out) * 4
    act = tile_b * 256 * 4
    return 2 * (x_tile + out_tile) + 2 * (w_bytes + b_bytes) + 4 * act


def dqn_kernel(x_ref, w1_ref, b1_ref, w2_ref, b2_ref,
               w3_ref, b3_ref, w4_ref, b4_ref, out_ref):
    """Fused 4-layer MLP: bf16 MXU matmuls, f32 accumulation, f32 bias+ReLU."""
    h = jnp.dot(x_ref[...], w1_ref[...],
                preferred_element_type=jnp.float32) + b1_ref[...]
    h = jnp.maximum(h, 0.0)
    h = jnp.dot(h.astype(jnp.bfloat16), w2_ref[...],
                preferred_element_type=jnp.float32) + b2_ref[...]
    h = jnp.maximum(h, 0.0)
    h = jnp.dot(h.astype(jnp.bfloat16), w3_ref[...],
                preferred_element_type=jnp.float32) + b3_ref[...]
    h = jnp.maximum(h, 0.0)
    out = jnp.dot(h.astype(jnp.bfloat16), w4_ref[...],
                  preferred_element_type=jnp.float32) + b4_ref[...]
    out_ref[...] = out.astype(out_ref.dtype)


def _build_call(Bp, tile_b, state_dim, n_out):
    grid = (Bp // tile_b,)

    def invariant(shape):
        # Grid-invariant block: same block index every step -> no re-DMA.
        return pl.BlockSpec(shape, lambda i: (0, 0))

    cp_kwargs = dict(dimension_semantics=("parallel",))
    need = _vmem_bytes_estimate(tile_b, state_dim, n_out)
    if need > _DEFAULT_SCOPED_VMEM:
        # Headroom, but stay well under v7x's 64 MiB physical VMEM per TC.
        cp_kwargs["vmem_limit_bytes"] = min(int(need * 1.25), 56 * 1024 * 1024)

    return pl.pallas_call(
        dqn_kernel,
        out_shape=jax.ShapeDtypeStruct((Bp, n_out), jnp.float32),
        grid=grid,
        in_specs=[
            pl.BlockSpec((tile_b, state_dim), lambda i: (i, 0)),   # x
            invariant((state_dim, 256)), invariant((1, 256)),      # w1, b1
            invariant((256, 256)), invariant((1, 256)),            # w2, b2
            invariant((256, 128)), invariant((1, 128)),            # w3, b3
            invariant((128, n_out)), invariant((1, n_out)),        # w4, b4
        ],
        out_specs=pl.BlockSpec((tile_b, n_out), lambda i: (i, 0)),
        compiler_params=pltpu.CompilerParams(**cp_kwargs),
    )


def prepare_params(params):
    """One-time conversion of f32 DQN parameters to kernel-ready form.

    Weights -> bf16; biases -> (1, n) f32; the final layer is zero-padded to a
    full 128-lane output width (lane-dense stores).  Call ONCE and reuse.
    """
    def as_bias(b):
        return jnp.asarray(b, jnp.float32).reshape(1, -1)

    w4 = jnp.asarray(params["w4"])
    action_dim = w4.shape[1]
    n_out = _round_up(action_dim, 128)
    w4p = jnp.zeros((w4.shape[0], n_out), jnp.bfloat16)
    w4p = w4p.at[:, :action_dim].set(w4.astype(jnp.bfloat16))
    b4p = jnp.zeros((1, n_out), jnp.float32)
    b4p = b4p.at[:, :action_dim].set(as_bias(params["b4"]))
    return dict(
        w1=jnp.asarray(params["w1"], jnp.bfloat16), b1=as_bias(params["b1"]),
        w2=jnp.asarray(params["w2"], jnp.bfloat16), b2=as_bias(params["b2"]),
        w3=jnp.asarray(params["w3"], jnp.bfloat16), b3=as_bias(params["b3"]),
        w4=w4p, b4=b4p, action_dim=action_dim,
    )


@functools.partial(jax.jit, static_argnames=("action_dim", "trim"))
def _dqn_forward_jit(x, w1, b1, w2, b2, w3, b3, w4, b4, *, action_dim, trim):
    B, state_dim = x.shape
    n_out = w4.shape[1]
    tile_b, Bp = _choose_tiling(B, _num_tensorcores_per_chip())

    xp = x.astype(jnp.bfloat16)           # halve input DMA; one cast, in-jit
    if Bp != B:
        # Zero rows only produce ReLU(bias) garbage that is trimmed below.
        xp = jnp.pad(xp, ((0, Bp - B), (0, 0)))

    out = _build_call(Bp, tile_b, state_dim, n_out)(
        xp, w1, b1, w2, b2, w3, b3, w4, b4)

    if trim:
        return out[:B, :action_dim]
    # Padded (Bp, n_out) contract: cheapest for consumers that index lazily.
    return out


def dqn_forward(x, prepared, *, trim=True):
    """x: [B, state_dim] float32 (or bf16). prepared: output of prepare_params."""
    return _dqn_forward_jit(
        x, prepared["w1"], prepared["b1"], prepared["w2"], prepared["b2"],
        prepared["w3"], prepared["b3"], prepared["w4"], prepared["b4"],
        action_dim=prepared["action_dim"], trim=trim)


def init_params(key, state_dim, action_dim):
    """Deterministic init mimicking PyTorch Linear default (U[-1/sqrt(fan_in), +])."""
    dims = [(state_dim, 256), (256, 256), (256, 128), (128, action_dim)]
    params = {}
    for idx, (fan_in, fan_out) in enumerate(dims, start=1):
        key, kw, kb = jax.random.split(key, 3)
        bound = 1.0 / float(fan_in) ** 0.5
        params[f"w{idx}"] = jax.random.uniform(
            kw, (fan_in, fan_out), jnp.float32, -bound, bound)
        params[f"b{idx}"] = jax.random.uniform(
            kb, (fan_out,), jnp.float32, -bound, bound)
    return params


def dqn_reference(x, p):
    h = jnp.maximum(x @ p["w1"] + p["b1"], 0.0)
    h = jnp.maximum(h @ p["w2"] + p["b2"], 0.0)
    h = jnp.maximum(h @ p["w3"] + p["b3"], 0.0)
    return h @ p["w4"] + p["b4"]


if __name__ == "__main__":
    state_dim = 16
    action_dim = 6
    batch = 64

    key = jax.random.PRNGKey(0)
    key, kx = jax.random.split(key)
    x = jax.random.normal(kx, (batch, state_dim), jnp.float32)

    params = init_params(key, state_dim, action_dim)
    prepared = prepare_params(params)     # one-time prep; reuse across calls

    out = jax.block_until_ready(dqn_forward(x, prepared))
    ref = dqn_reference(x, params)

    assert out.shape == (batch, action_dim)
    max_err = float(jnp.max(jnp.abs(out - ref)))
    # bf16 matmul inputs (f32 accumulation) -> relaxed tolerance vs f32 ref.
    assert max_err < 5e-2, max_err

    print("KERNEL_OK")
</pallas_src>

<mosaic_0001>
module attributes {stable_mosaic.version = 11 : i64} {
  func.func @dqn_kernel(%arg0: i32, %arg1: memref<64x16xbf16, #tpu.memory_space<vmem>>, %arg2: memref<16x256xbf16, #tpu.memory_space<vmem>>, %arg3: memref<1x256xf32, #tpu.memory_space<vmem>>, %arg4: memref<256x256xbf16, #tpu.memory_space<vmem>>, %arg5: memref<1x256xf32, #tpu.memory_space<vmem>>, %arg6: memref<256x128xbf16, #tpu.memory_space<vmem>>, %arg7: memref<1x128xf32, #tpu.memory_space<vmem>>, %arg8: memref<128x128xbf16, #tpu.memory_space<vmem>>, %arg9: memref<1x128xf32, #tpu.memory_space<vmem>>, %arg10: memref<64x128xf32, #tpu.memory_space<vmem>>) attributes {dimension_semantics = [#tpu.dimension_semantics<parallel>], iteration_bounds = array<i64: 1>, scalar_prefetch = 0 : i64, scratch_operands = 0 : i64, tpu.core_type = #tpu.core_type<tc>, window_params = [{transform_indices = @transform_0, window_bounds = array<i64: 64, 16>}, {pipeline_mode = #tpu.pipeline_mode<synchronous>, transform_indices = @transform_1, window_bounds = array<i64: 16, 256>}, {pipeline_mode = #tpu.pipeline_mode<synchronous>, transform_indices = @transform_2, window_bounds = array<i64: 1, 256>}, {pipeline_mode = #tpu.pipeline_mode<synchronous>, transform_indices = @transform_3, window_bounds = array<i64: 256, 256>}, {pipeline_mode = #tpu.pipeline_mode<synchronous>, transform_indices = @transform_4, window_bounds = array<i64: 1, 256>}, {pipeline_mode = #tpu.pipeline_mode<synchronous>, transform_indices = @transform_5, window_bounds = array<i64: 256, 128>}, {pipeline_mode = #tpu.pipeline_mode<synchronous>, transform_indices = @transform_6, window_bounds = array<i64: 1, 128>}, {pipeline_mode = #tpu.pipeline_mode<synchronous>, transform_indices = @transform_7, window_bounds = array<i64: 128, 128>}, {pipeline_mode = #tpu.pipeline_mode<synchronous>, transform_indices = @transform_8, window_bounds = array<i64: 1, 128>}, {transform_indices = @transform_9, window_bounds = array<i64: 64, 128>}]} {
    %c0 = arith.constant 0 : index
    %c0_0 = arith.constant 0 : index
    %0 = vector.load %arg1[%c0, %c0_0] : memref<64x16xbf16, #tpu.memory_space<vmem>>, vector<64x16xbf16>
    %c0_1 = arith.constant 0 : index
    %c0_2 = arith.constant 0 : index
    %1 = vector.load %arg2[%c0_1, %c0_2] : memref<16x256xbf16, #tpu.memory_space<vmem>>, vector<16x256xbf16>
    %cst = arith.constant dense<0.000000e+00> : vector<64x256xf32>
    %2 = tpu.matmul %0, %1, %cst {dimension_numbers = #tpu.dot_dimension_numbers<[1], [0], [0], [1], [0, 0, 1, 1], [], []>} : vector<64x16xbf16>, vector<16x256xbf16>, vector<64x256xf32> -> vector<64x256xf32>
    %c0_3 = arith.constant 0 : index
    %c0_4 = arith.constant 0 : index
    %3 = vector.load %arg3[%c0_3, %c0_4] : memref<1x256xf32, #tpu.memory_space<vmem>>, vector<1x256xf32>
    %4 = vector.broadcast %3 : vector<1x256xf32> to vector<64x256xf32>
    %5 = arith.addf %2, %4 : vector<64x256xf32>
    %cst_5 = arith.constant 0.000000e+00 : f32
    %6 = vector.broadcast %cst_5 : f32 to vector<64x256xf32>
    %7 = arith.maximumf %5, %6 : vector<64x256xf32>
    %8 = arith.truncf %7 : vector<64x256xf32> to vector<64x256xbf16>
    %c0_6 = arith.constant 0 : index
    %c0_7 = arith.constant 0 : index
    %9 = vector.load %arg4[%c0_6, %c0_7] : memref<256x256xbf16, #tpu.memory_space<vmem>>, vector<256x256xbf16>
    %cst_8 = arith.constant dense<0.000000e+00> : vector<64x256xf32>
    %10 = tpu.matmul %8, %9, %cst_8 {dimension_numbers = #tpu.dot_dimension_numbers<[1], [0], [0], [1], [0, 0, 1, 1], [], []>} : vector<64x256xbf16>, vector<256x256xbf16>, vector<64x256xf32> -> vector<64x256xf32>
    %c0_9 = arith.constant 0 : index
    %c0_10 = arith.constant 0 : index
    %11 = vector.load %arg5[%c0_9, %c0_10] : memref<1x256xf32, #tpu.memory_space<vmem>>, vector<1x256xf32>
    %12 = vector.broadcast %11 : vector<1x256xf32> to vector<64x256xf32>
    %13 = arith.addf %10, %12 : vector<64x256xf32>
    %cst_11 = arith.constant 0.000000e+00 : f32
    %14 = vector.broadcast %cst_11 : f32 to vector<64x256xf32>
    %15 = arith.maximumf %13, %14 : vector<64x256xf32>
    %16 = arith.truncf %15 : vector<64x256xf32> to vector<64x256xbf16>
    %c0_12 = arith.constant 0 : index
    %c0_13 = arith.constant 0 : index
    %17 = vector.load %arg6[%c0_12, %c0_13] : memref<256x128xbf16, #tpu.memory_space<vmem>>, vector<256x128xbf16>
    %cst_14 = arith.constant dense<0.000000e+00> : vector<64x128xf32>
    %18 = tpu.matmul %16, %17, %cst_14 {dimension_numbers = #tpu.dot_dimension_numbers<[1], [0], [0], [1], [0, 0, 1, 1], [], []>} : vector<64x256xbf16>, vector<256x128xbf16>, vector<64x128xf32> -> vector<64x128xf32>
    %c0_15 = arith.constant 0 : index
    %c0_16 = arith.constant 0 : index
    %19 = vector.load %arg7[%c0_15, %c0_16] : memref<1x128xf32, #tpu.memory_space<vmem>>, vector<1x128xf32>
    %20 = vector.broadcast %19 : vector<1x128xf32> to vector<64x128xf32>
    %21 = arith.addf %18, %20 : vector<64x128xf32>
    %cst_17 = arith.constant 0.000000e+00 : f32
    %22 = vector.broadcast %cst_17 : f32 to vector<64x128xf32>
    %23 = arith.maximumf %21, %22 : vector<64x128xf32>
    %24 = arith.truncf %23 : vector<64x128xf32> to vector<64x128xbf16>
    %c0_18 = arith.constant 0 : index
    %c0_19 = arith.constant 0 : index
    %25 = vector.load %arg8[%c0_18, %c0_19] : memref<128x128xbf16, #tpu.memory_space<vmem>>, vector<128x128xbf16>
    %cst_20 = arith.constant dense<0.000000e+00> : vector<64x128xf32>
    %26 = tpu.matmul %24, %25, %cst_20 {dimension_numbers = #tpu.dot_dimension_numbers<[1], [0], [0], [1], [0, 0, 1, 1], [], []>} : vector<64x128xbf16>, vector<128x128xbf16>, vector<64x128xf32> -> vector<64x128xf32>
    %c0_21 = arith.constant 0 : index
    %c0_22 = arith.constant 0 : index
    %27 = vector.load %arg9[%c0_21, %c0_22] : memref<1x128xf32, #tpu.memory_space<vmem>>, vector<1x128xf32>
    %28 = vector.broadcast %27 : vector<1x128xf32> to vector<64x128xf32>
    %29 = arith.addf %26, %28 : vector<64x128xf32>
    %c0_23 = arith.constant 0 : index
    %c0_24 = arith.constant 0 : index
    %30 = vector.load %arg10[%c0_23, %c0_24] : memref<64x128xf32, #tpu.memory_space<vmem>>, vector<64x128xf32>
    tpu.vector_store %arg10[%c0_23, %c0_24], %29 {strides = array<i32>} : memref<64x128xf32, #tpu.memory_space<vmem>>, vector<64x128xf32>,
    return
  }
  func.func @transform_0(%arg0: i32) -> (i32, i32) {
    %c0_i32 = arith.constant 0 : i32
    %c0_i32_0 = arith.constant 0 : i32
    return %arg0, %c0_i32 : i32, i32
  }
  func.func @transform_1(%arg0: i32) -> (i32, i32) {
    %c0_i32 = arith.constant 0 : i32
    %c0_i32_0 = arith.constant 0 : i32
    %c0_i32_1 = arith.constant 0 : i32
    return %c0_i32, %c0_i32_0 : i32, i32
  }
  func.func @transform_2(%arg0: i32) -> (i32, i32) {
    %c0_i32 = arith.constant 0 : i32
    %c0_i32_0 = arith.constant 0 : i32
    %c0_i32_1 = arith.constant 0 : i32
    return %c0_i32, %c0_i32_0 : i32, i32
  }
  func.func @transform_3(%arg0: i32) -> (i32, i32) {
    %c0_i32 = arith.constant 0 : i32
    %c0_i32_0 = arith.constant 0 : i32
    %c0_i32_1 = arith.constant 0 : i32
    return %c0_i32, %c0_i32_0 : i32, i32
  }
  func.func @transform_4(%arg0: i32) -> (i32, i32) {
    %c0_i32 = arith.constant 0 : i32
    %c0_i32_0 = arith.constant 0 : i32
    %c0_i32_1 = arith.constant 0 : i32
    return %c0_i32, %c0_i32_0 : i32, i32
  }
  func.func @transform_5(%arg0: i32) -> (i32, i32) {
    %c0_i32 = arith.constant 0 : i32
    %c0_i32_0 = arith.constant 0 : i32
    %c0_i32_1 = arith.constant 0 : i32
    return %c0_i32, %c0_i32_0 : i32, i32
  }
  func.func @transform_6(%arg0: i32) -> (i32, i32) {
    %c0_i32 = arith.constant 0 : i32
    %c0_i32_0 = arith.constant 0 : i32
    %c0_i32_1 = arith.constant 0 : i32
    return %c0_i32, %c0_i32_0 : i32, i32
  }
  func.func @transform_7(%arg0: i32) -> (i32, i32) {
    %c0_i32 = arith.constant 0 : i32
    %c0_i32_0 = arith.constant 0 : i32
    %c0_i32_1 = arith.constant 0 : i32
    return %c0_i32, %c0_i32_0 : i32, i32
  }
  func.func @transform_8(%arg0: i32) -> (i32, i32) {
    %c0_i32 = arith.constant 0 : i32
    %c0_i32_0 = arith.constant 0 : i32
    %c0_i32_1 = arith.constant 0 : i32
    return %c0_i32, %c0_i32_0 : i32, i32
  }
  func.func @transform_9(%arg0: i32) -> (i32, i32) {
    %c0_i32 = arith.constant 0 : i32
    %c0_i32_0 = arith.constant 0 : i32
    return %arg0, %c0_i32 : i32, i32
  }
}

</mosaic_0001>

<llo_original>
// kernel: _dqn_forward_jit.1
$region0: #{_dqn_forward_jit.1}
  #allocation0 [shape = 'u32[]', space=smem, size = 0x4, offset = 0x4, fixed_abs, tag = 'smem constant byte address 0x4 - core index']
  #allocation1 [shape = 'u32[144,128]{1,0:T(1,128)}', space=vmem, size = 0x12000, scoped, tag = 'internal scratch']
  %s0 = inlined_call_operand.vmem [shape: bf16[64,16], index: 0, kind: input, shape index: {}]
  %s1 = inlined_call_operand.vmem [shape: bf16[16,256], index: 1, kind: input, shape index: {}]
  %s2 = inlined_call_operand.vmem [shape: f32[1,256], index: 2, kind: input, shape index: {}]
  %s3 = inlined_call_operand.hbm [shape: bf16[256,256], index: 3, kind: input, shape index: {}]
  %s4 = inlined_call_operand.vmem [shape: f32[1,256], index: 4, kind: input, shape index: {}]
  %s5 = inlined_call_operand.hbm [shape: bf16[256,128], index: 5, kind: input, shape index: {}]
  %s6 = inlined_call_operand.vmem [shape: f32[1,128], index: 6, kind: input, shape index: {}]
  %s7 = inlined_call_operand.vmem [shape: bf16[128,128], index: 7, kind: input, shape index: {}]
  %s8 = inlined_call_operand.vmem [shape: f32[1,128], index: 8, kind: input, shape index: {}]
  %s9 = inlined_call_operand.vmem [shape: f32[64,128], index: 9, kind: output, shape index: {}]
  %s10 = sld [smem:[#allocation0]]
  $region54: #{_dqn_forward_jit.1} parent=0
    _
  %s12 = ssub.s32 1, %s10
  %s13 = scalar_select 0, %s12, %s10
  $region1: #{_dqn_forward_jit.1} parent=0
    #allocation2 [shape = 'u8[131072]{0}', space=vmem, size = 0x20000, scoped, tag = 'input window, operand 3, single buffered']
    #allocation3 [shape = 's32[1]{0}', space=sflag, size = 0x4, scoped, tag = 'scoped memory for _dqn_forward_jit.1']
    #allocation4 [shape = 'u8[65536]{0}', space=vmem, size = 0x10000, scoped, tag = 'input window, operand 5, single buffered']
    #allocation5 [shape = 's32[1]{0}', space=sflag, size = 0x4, scoped, tag = 'scoped memory for _dqn_forward_jit.1']
    %14 = vsyncpa [#allocation3], 0
    %15 = vsyncpa [#allocation5], 0
    // Predicated region
    $region2: #{_dqn_forward_jit.1} parent=1 // pred_check
      _
    $region3: #{_dqn_forward_jit.1} parent=1 // pred_check_branch
      %17 = sbr.rel (0) target = $region5
    $region4: #{_dqn_forward_jit.1} parent=1 // pred_region
      _
    $region5: #{_dqn_forward_jit.1} parent=1 // pred_fallthru
      _
    // Predicated region
    $region6: #{_dqn_forward_jit.1} parent=1 // pred_check
      _
    $region7: #{_dqn_forward_jit.1} parent=1 // pred_check_branch
      %19 = sbr.rel (0) target = $region9
    $region8: #{_dqn_forward_jit.1} parent=1 // pred_region
      _
    $region9: #{_dqn_forward_jit.1} parent=1 // pred_fallthru
      _
    // Predicated region
    $region10: #{_dqn_forward_jit.1} parent=1 // pred_check
      _
    $region11: #{_dqn_forward_jit.1} parent=1 // pred_check_branch
      %21 = sbr.rel (0) target = $region13
    $region12: #{_dqn_forward_jit.1} parent=1 // pred_region
      _
    $region13: #{_dqn_forward_jit.1} parent=1 // pred_fallthru
      _
    // Predicated region
    $region14: #{_dqn_forward_jit.1} parent=1 // pred_check
      _
    $region15: #{_dqn_forward_jit.1} parent=1 // pred_check_branch
      %23 = sbr.rel (0) target = $region17
    $region16: #{_dqn_forward_jit.1} parent=1 // pred_region
      %s25 = ssub.s32 4096, 4096
      %26 = vsyncadd [#allocation3], %s25
      %s27 = sshll.u32 [#allocation2], 4
      %s28 = int_to_ptr.vmem [resolvable:$true] %s27
      %33 = dma.hbm_to_vmem [thread:$0]  %s3, 4096, %s28, [#allocation3], 128, 128, 8
    $region17: #{_dqn_forward_jit.1} parent=1 // pred_fallthru
      _
    // Predicated region
    $region18: #{_dqn_forward_jit.1} parent=1 // pred_check
      _
    $region19: #{_dqn_forward_jit.1} parent=1 // pred_check_branch
      %35 = sbr.rel (0) target = $region21
    $region20: #{_dqn_forward_jit.1} parent=1 // pred_region
      _
    $region21: #{_dqn_forward_jit.1} parent=1 // pred_fallthru
      _
    // Predicated region
    $region22: #{_dqn_forward_jit.1} parent=1 // pred_check
      _
    $region23: #{_dqn_forward_jit.1} parent=1 // pred_check_branch
      %37 = sbr.rel (0) target = $region25
    $region24: #{_dqn_forward_jit.1} parent=1 // pred_region
      %s39 = ssub.s32 2048, 2048
      %40 = vsyncadd [#allocation5], %s39
      %s41 = sshll.u32 [#allocation4], 4
      %s42 = int_to_ptr.vmem [resolvable:$true] %s41
      %47 = dma.hbm_to_vmem [thread:$0]  %s5, 2048, %s42, [#allocation5], 64, 64, 4
    $region25: #{_dqn_forward_jit.1} parent=1 // pred_fallthru
      _
    // Predicated region
    $region26: #{_dqn_forward_jit.1} parent=1 // pred_check
      _
    $region27: #{_dqn_forward_jit.1} parent=1 // pred_check_branch
      %49 = sbr.rel (0) target = $region29
    $region28: #{_dqn_forward_jit.1} parent=1 // pred_region
      _
    $region29: #{_dqn_forward_jit.1} parent=1 // pred_fallthru
      _
    // Predicated region
    $region30: #{_dqn_forward_jit.1} parent=1 // pred_check
      _
    $region31: #{_dqn_forward_jit.1} parent=1 // pred_check_branch
      %51 = sbr.rel (0) target = $region33
    $region32: #{_dqn_forward_jit.1} parent=1 // pred_region
      _
    $region33: #{_dqn_forward_jit.1} parent=1 // pred_fallthru
      _
    // Predicated region
    $region34: #{_dqn_forward_jit.1} parent=1 // pred_check
      _
    $region35: #{_dqn_forward_jit.1} parent=1 // pred_check_branch
      %53 = sbr.rel (0) target = $region37
    $region36: #{_dqn_forward_jit.1} parent=1 // pred_region
      _
    $region37: #{_dqn_forward_jit.1} parent=1 // pred_fallthru
      _
    // Predicated region
    $region38: #{_dqn_forward_jit.1} parent=1 // pred_check
      _
    $region39: #{_dqn_forward_jit.1} parent=1 // pred_check_branch
      %55 = sbr.rel (0) target = $region41
    $region40: #{_dqn_forward_jit.1} parent=1 // pred_region
      %56 = dma.done [#allocation3], 4096
    $region41: #{_dqn_forward_jit.1} parent=1 // pred_fallthru
      _
    // Predicated region
    $region42: #{_dqn_forward_jit.1} parent=1 // pred_check
      _
    $region43: #{_dqn_forward_jit.1} parent=1 // pred_check_branch
      %58 = sbr.rel (0) target = $region45
    $region44: #{_dqn_forward_jit.1} parent=1 // pred_region
      %59 = dma.done [#allocation5], 2048
    $region45: #{_dqn_forward_jit.1} parent=1 // pred_fallthru
      _
    %v61 = vld [vmem:[%s0] sm:$0xf]
    %v62 = vld [vmem:[%s0 + $0x4] sm:$0xf]
    %v63 = vld [vmem:[%s0 + $0x8] sm:$0xf]
    %v64 = vld [vmem:[%s0 + $0xc] sm:$0xf]
    %v65 = vld [vmem:[%s0 + $0x10] sm:$0xf]
    %v66 = vld [vmem:[%s0 + $0x14] sm:$0xf]
    %v67 = vld [vmem:[%s0 + $0x18] sm:$0xf]
    %v68 = vld [vmem:[%s0 + $0x1c] sm:$0xf]
    %v69 = vld [vmem:[%s1] sm:$0xff]
    %v70 = vld [vmem:[%s1 + $0x8] sm:$0xff]
    %v71 = vld [vmem:[%s2] sm:$0x3]
    %v73 = vlaneseq
    %v74 = vshrl.u32 %v73, 7
    %v75 = vsub.s32 0, %v74
    %v76 = vrot.slane %v71, %v75
    %v77 = vlaneseq
    %v78 = vshrl.u32 %v77, 7
    %v79 = vsub.s32 1, %v78
    %v80 = vrot.slane %v71, %v79
    %v91 = vunpack.c.l.b16 %v61
    %v92 = vunpack.c.l.b16 %v62
    %v93 = vunpack.c.l.b16 %v63
    %v94 = vunpack.c.l.b16 %v64
    %v95 = vunpack.c.l.b16 %v65
    %v96 = vunpack.c.l.b16 %v66
    %v97 = vunpack.c.l.b16 %v67
    %v98 = vunpack.c.l.b16 %v68
    %v99 = vpack.c.b16 %v92, %v91
    %v100 = vpack.c.b16 %v94, %v93
    %v101 = vpack.c.b16 %v96, %v95
    %v102 = vpack.c.b16 %v98, %v97
    %v105 = vunpack.c.l.b16 %v69
    %v106 = vunpack.c.h.b16 %v69
    %v107 = vunpack.c.l.b16 %v70
    %v108 = vunpack.c.h.b16 %v70
    %v109 = vpack.c.b16 %v107, %v105
    %v110 = vpack.c.b16 %v108, %v106
    %vm113 = vcmask 130048
    %v115 = vsel %vm113, %v99, 0
    %v118 = vsel %vm113, %v100, 0
    %v121 = vsel %vm113, %v101, 0
    %v124 = vsel %vm113, %v102, 0
    %126 = vmatprep.subr.bf16.mxu0 %v110
    %127 = vmatpush1.bf16.msra.mxu0 %v109
    %128 = vmatprep.subr.bf16.mxu0 0
    %129 = vmatpush1.bf16.msra.mxu0 0
    %130 = vmatprep.subr.bf16.mxu0 0
    %131 = vmatpush1.bf16.msra.mxu0 0
    %132 = vmatprep.subr.bf16.mxu0 0
    %133 = vmatpush1.bf16.msra.mxu0 0
    %134 = vmatprep.subr.bf16.mxu0 0
    %135 = vmatpush1.bf16.msra.mxu0 0
    %136 = vmatprep.subr.bf16.mxu0 0
    %137 = vmatpush1.bf16.msra.mxu0 0
    %138 = vmatprep.subr.bf16.mxu0 0
    %139 = vmatpush1.bf16.msra.mxu0 0
    %140 = vmatprep.subr.bf16.mxu0 0
    %141 = vmatpush1.bf16.msra.mxu0 0
    %142 = vmatprep.subr.bf16.mxu0 0
    %143 = vmatpush1.bf16.msra.mxu0 0
    %144 = vmatprep.subr.bf16.mxu0 0
    %145 = vmatpush1.bf16.msra.mxu0 0
    %146 = vmatprep.subr.bf16.mxu0 0
    %147 = vmatpush1.bf16.msra.mxu0 0
    %148 = vmatprep.subr.bf16.mxu0 0
    %149 = vmatpush1.bf16.msra.mxu0 0
    %150 = vmatprep.subr.bf16.mxu0 0
    %151 = vmatpush1.bf16.msra.mxu0 0
    %152 = vmatprep.subr.bf16.mxu0 0
    %153 = vmatpush1.bf16.msra.mxu0 0
    %154 = vmatprep.subr.bf16.mxu0 0
    %155 = vmatpush1.bf16.msra.mxu0 0
    %156 = vmatprep.subr.bf16.mxu0 0
    %157 = vmatpush1.bf16.msra.mxu0 0
    %158 = vmatprep.mubr.bf16.mxu0 0
    %159 = vmatmul.mubr.bf16.gmra.mrb[0].mxu0 %v115
    %v160 = vpop.f32.mrb[0].mxu0
    %v161 = vadd.f32 %v76, %v160
    %v162 = vpop.f32.mrb[0].mxu0
    %v163 = vadd.f32 %v80, %v162
    %v164 = vpop.f32.mrb[0].mxu0
    %v165 = vadd.f32 %v76, %v164
    %v166 = vpop.f32.mrb[0].mxu0
    %v167 = vadd.f32 %v80, %v166
    %168 = vmatprep.mubr.bf16.mxu0 0
    %169 = vmatmul.mubr.bf16.gmra.mrb[0].mxu0 %v118
    %v170 = vpop.f32.mrb[0].mxu0
    %v171 = vadd.f32 %v76, %v170
    %v172 = vpop.f32.mrb[0].mxu0
    %v173 = vadd.f32 %v80, %v172
    %v174 = vpop.f32.mrb[0].mxu0
    %v175 = vadd.f32 %v76, %v174
    %v176 = vpop.f32.mrb[0].mxu0
    %v177 = vadd.f32 %v80, %v176
    %178 = vmatprep.mubr.bf16.mxu0 0
    %179 = vmatmul.mubr.bf16.gmra.mrb[0].mxu0 %v121
    %v180 = vpop.f32.mrb[0].mxu0
    %v181 = vadd.f32 %v76, %v180
    %v182 = vpop.f32.mrb[0].mxu0
    %v183 = vadd.f32 %v80, %v182
    %v184 = vpop.f32.mrb[0].mxu0
    %v185 = vadd.f32 %v76, %v184
    %v186 = vpop.f32.mrb[0].mxu0
    %v187 = vadd.f32 %v80, %v186
    %188 = vmatprep.mubr.bf16.mxu0 0
    %189 = vmatmul.mubr.bf16.gmra.mrb[0].mxu0 %v124
    %v190 = vpop.f32.mrb[0].mxu0
    %v191 = vadd.f32 %v76, %v190
    %v192 = vpop.f32.mrb[0].mxu0
    %v193 = vadd.f32 %v80, %v192
    %v194 = vpop.f32.mrb[0].mxu0
    %v195 = vadd.f32 %v76, %v194
    %v196 = vpop.f32.mrb[0].mxu0
    %v197 = vadd.f32 %v80, %v196
    %198 = vdwg.mxu0
    %v199 = vmax.f32 %v161, 0.0
    %v200 = vmax.f32 %v163, 0.0
    %v201 = vmax.f32 %v165, 0.0
    %v202 = vmax.f32 %v167, 0.0
    %v203 = vmax.f32 %v171, 0.0
    %v204 = vmax.f32 %v173, 0.0
    %v205 = vmax.f32 %v175, 0.0
    %v206 = vmax.f32 %v177, 0.0
    %v207 = vmax.f32 %v181, 0.0
    %v208 = vmax.f32 %v183, 0.0
    %v209 = vmax.f32 %v185, 0.0
    %v210 = vmax.f32 %v187, 0.0
    %v211 = vmax.f32 %v191, 0.0
    %v212 = vmax.f32 %v193, 0.0
    %v213 = vmax.f32 %v195, 0.0
    %v214 = vmax.f32 %v197, 0.0
    %v215 = vpack.c.bf16 %v201, %v199
    %v216 = vpack.c.bf16 %v202, %v200
    %v217 = vpack.c.bf16 %v205, %v203
    %v218 = vpack.c.bf16 %v206, %v204
    %v219 = vpack.c.bf16 %v209, %v207
    %v220 = vpack.c.bf16 %v210, %v208
    %v221 = vpack.c.bf16 %v213, %v211
    %v222 = vpack.c.bf16 %v214, %v212
    %v223 = vld [vmem:[#allocation2] sm:$0xff]
    %v224 = vld [vmem:[#allocation2 + $0x8] sm:$0xff]
    %v225 = vld [vmem:[#allocation2 + $0x10] sm:$0xff]
    %v226 = vld [vmem:[#allocation2 + $0x18] sm:$0xff]
    %v227 = vld [vmem:[#allocation2 + $0x20] sm:$0xff]
    %v228 = vld [vmem:[#allocation2 + $0x28] sm:$0xff]
    %v229 = vld [vmem:[#allocation2 + $0x30] sm:$0xff]
    %v230 = vld [vmem:[#allocation2 + $0x38] sm:$0xff]
    %v231 = vld [vmem:[#allocation2 + $0x40] sm:$0xff]
    %v232 = vld [vmem:[#allocation2 + $0x48] sm:$0xff]
    %v233 = vld [vmem:[#allocation2 + $0x50] sm:$0xff]
    %v234 = vld [vmem:[#allocation2 + $0x58] sm:$0xff]
    %v235 = vld [vmem:[#allocation2 + $0x60] sm:$0xff]
    %v236 = vld [vmem:[#allocation2 + $0x68] sm:$0xff]
    %v237 = vld [vmem:[#allocation2 + $0x70] sm:$0xff]
    %v238 = vld [vmem:[#allocation2 + $0x78] sm:$0xff]
    %v239 = vld [vmem:[#allocation2 + $0x80] sm:$0xff]
    %v240 = vld [vmem:[#allocation2 + $0x88] sm:$0xff]
    %v241 = vld [vmem:[#allocation2 + $0x90] sm:$0xff]
    %v242 = vld [vmem:[#allocation2 + $0x98] sm:$0xff]
    %v243 = vld [vmem:[#allocation2 + $0xa0] sm:$0xff]
    %v244 = vld [vmem:[#allocation2 + $0xa8] sm:$0xff]
    %v245 = vld [vmem:[#allocation2 + $0xb0] sm:$0xff]
    %v246 = vld [vmem:[#allocation2 + $0xb8] sm:$0xff]
    %v247 = vld [vmem:[#allocation2 + $0xc0] sm:$0xff]
    %v248 = vld [vmem:[#allocation2 + $0xc8] sm:$0xff]
    %v249 = vld [vmem:[#allocation2 + $0xd0] sm:$0xff]
    %v250 = vld [vmem:[#allocation2 + $0xd8] sm:$0xff]
    %v251 = vld [vmem:[#allocation2 + $0xe0] sm:$0xff]
    %v252 = vld [vmem:[#allocation2 + $0xe8] sm:$0xff]
    %v253 = vld [vmem:[#allocation2 + $0xf0] sm:$0xff]
    %v254 = vld [vmem:[#allocation2 + $0xf8] sm:$0xff]
    %v255 = vld [vmem:[%s4] sm:$0x3]
    %v257 = vlaneseq
    %v258 = vshrl.u32 %v257, 7
    %v259 = vsub.s32 0, %v258
    %v260 = vrot.slane %v255, %v259
    %v261 = vlaneseq
    %v262 = vshrl.u32 %v261, 7
    %v263 = vsub.s32 1, %v262
    %v264 = vrot.slane %v255, %v263
    %v299 = vunpack.c.l.b16 %v223
    %v300 = vunpack.c.h.b16 %v223
    %v301 = vunpack.c.l.b16 %v224
    %v302 = vunpack.c.h.b16 %v224
    %v303 = vunpack.c.l.b16 %v225
    %v304 = vunpack.c.h.b16 %v225
    %v305 = vunpack.c.l.b16 %v226
    %v306 = vunpack.c.h.b16 %v226
    %v307 = vunpack.c.l.b16 %v227
    %v308 = vunpack.c.h.b16 %v227
    %v309 = vunpack.c.l.b16 %v228
    %v310 = vunpack.c.h.b16 %v228
    %v311 = vunpack.c.l.b16 %v229
    %v312 = vunpack.c.h.b16 %v229
    %v313 = vunpack.c.l.b16 %v230
    %v314 = vunpack.c.h.b16 %v230
    %v315 = vunpack.c.l.b16 %v231
    %v316 = vunpack.c.h.b16 %v231
    %v317 = vunpack.c.l.b16 %v232
    %v318 = vunpack.c.h.b16 %v232
    %v319 = vunpack.c.l.b16 %v233
    %v320 = vunpack.c.h.b16 %v233
    %v321 = vunpack.c.l.b16 %v234
    %v322 = vunpack.c.h.b16 %v234
    %v323 = vunpack.c.l.b16 %v235
    %v324 = vunpack.c.h.b16 %v235
    %v325 = vunpack.c.l.b16 %v236
    %v326 = vunpack.c.h.b16 %v236
    %v327 = vunpack.c.l.b16 %v237
    %v328 = vunpack.c.h.b16 %v237
    %v329 = vunpack.c.l.b16 %v238
    %v330 = vunpack.c.h.b16 %v238
    %v331 = vunpack.c.l.b16 %v239
    %v332 = vunpack.c.h.b16 %v239
    %v333 = vunpack.c.l.b16 %v240
    %v334 = vunpack.c.h.b16 %v240
    %v335 = vunpack.c.l.b16 %v241
    %v336 = vunpack.c.h.b16 %v241
    %v337 = vunpack.c.l.b16 %v242
    %v338 = vunpack.c.h.b16 %v242
    %v339 = vunpack.c.l.b16 %v243
    %v340 = vunpack.c.h.b16 %v243
    %v341 = vunpack.c.l.b16 %v244
    %v342 = vunpack.c.h.b16 %v244
    %v343 = vunpack.c.l.b16 %v245
    %v344 = vunpack.c.h.b16 %v245
    %v345 = vunpack.c.l.b16 %v246
    %v346 = vunpack.c.h.b16 %v246
    %v347 = vunpack.c.l.b16 %v247
    %v348 = vunpack.c.h.b16 %v247
    %v349 = vunpack.c.l.b16 %v248
    %v350 = vunpack.c.h.b16 %v248
    %v351 = vunpack.c.l.b16 %v249
    %v352 = vunpack.c.h.b16 %v249
    %v353 = vunpack.c.l.b16 %v250
    %v354 = vunpack.c.h.b16 %v250
    %v355 = vunpack.c.l.b16 %v251
    %v356 = vunpack.c.h.b16 %v251
    %v357 = vunpack.c.l.b16 %v252
    %v358 = vunpack.c.h.b16 %v252
    %v359 = vunpack.c.l.b16 %v253
    %v360 = vunpack.c.h.b16 %v253
    %v361 = vunpack.c.l.b16 %v254
    %v362 = vunpack.c.h.b16 %v254
    %v363 = vpack.c.b16 %v301, %v299
    %v364 = vpack.c.b16 %v302, %v300
    %v365 = vpack.c.b16 %v305, %v303
    %v366 = vpack.c.b16 %v306, %v304
    %v367 = vpack.c.b16 %v309, %v307
    %v368 = vpack.c.b16 %v310, %v308
    %v369 = vpack.c.b16 %v313, %v311
    %v370 = vpack.c.b16 %v314, %v312
    %v371 = vpack.c.b16 %v317, %v315
    %v372 = vpack.c.b16 %v318, %v316
    %v373 = vpack.c.b16 %v321, %v319
    %v374 = vpack.c.b16 %v322, %v320
    %v375 = vpack.c.b16 %v325, %v323
    %v376 = vpack.c.b16 %v326, %v324
    %v377 = vpack.c.b16 %v329, %v327
    %v378 = vpack.c.b16 %v330, %v328
    %v379 = vpack.c.b16 %v333, %v331
    %v380 = vpack.c.b16 %v334, %v332
    %v381 = vpack.c.b16 %v337, %v335
    %v382 = vpack.c.b16 %v338, %v336
    %v383 = vpack.c.b16 %v341, %v339
    %v384 = vpack.c.b16 %v342, %v340
    %v385 = vpack.c.b16 %v345, %v343
    %v386 = vpack.c.b16 %v346, %v344
    %v387 = vpack.c.b16 %v349, %v347
    %v388 = vpack.c.b16 %v350, %v348
    %v389 = vpack.c.b16 %v353, %v351
    %v390 = vpack.c.b16 %v354, %v352
    %v391 = vpack.c.b16 %v357, %v355
    %v392 = vpack.c.b16 %v358, %v356
    %v393 = vpack.c.b16 %v361, %v359
    %v394 = vpack.c.b16 %v362, %v360
    %427 = vmatprep.subr.bf16.mxu0 %v364
    %428 = vmatpush1.bf16.msra.mxu0 %v363
    %429 = vmatprep.subr.bf16.mxu0 %v366
    %430 = vmatpush1.bf16.msra.mxu0 %v365
    %431 = vmatprep.subr.bf16.mxu0 %v368
    %432 = vmatpush1.bf16.msra.mxu0 %v367
    %433 = vmatprep.subr.bf16.mxu0 %v370
    %434 = vmatpush1.bf16.msra.mxu0 %v369
    %435 = vmatprep.subr.bf16.mxu0 %v372
    %436 = vmatpush1.bf16.msra.mxu0 %v371
    %437 = vmatprep.subr.bf16.mxu0 %v374
    %438 = vmatpush1.bf16.msra.mxu0 %v373
    %439 = vmatprep.subr.bf16.mxu0 %v376
    %440 = vmatpush1.bf16.msra.mxu0 %v375
    %441 = vmatprep.subr.bf16.mxu0 %v378
    %442 = vmatpush1.bf16.msra.mxu0 %v377
    %443 = vmatprep.subr.bf16.mxu0 %v380
    %444 = vmatpush1.bf16.msra.mxu0 %v379
    %445 = vmatprep.subr.bf16.mxu0 %v382
    %446 = vmatpush1.bf16.msra.mxu0 %v381
    %447 = vmatprep.subr.bf16.mxu0 %v384
    %448 = vmatpush1.bf16.msra.mxu0 %v383
    %449 = vmatprep.subr.bf16.mxu0 %v386
    %450 = vmatpush1.bf16.msra.mxu0 %v385
    %451 = vmatprep.subr.bf16.mxu0 %v388
    %452 = vmatpush1.bf16.msra.mxu0 %v387
    %453 = vmatprep.subr.bf16.mxu0 %v390
    %454 = vmatpush1.bf16.msra.mxu0 %v389
    %455 = vmatprep.subr.bf16.mxu0 %v392
    %456 = vmatpush1.bf16.msra.mxu0 %v391
    %457 = vmatprep.subr.bf16.mxu0 %v394
    %458 = vmatpush1.bf16.msra.mxu0 %v393
    %459 = vmatprep.mubr.bf16.mxu0 %v216
    %460 = vmatmul.mubr.bf16.gmra.mrb[0].mxu0 %v215
    %v461 = vpop.f32.mrb[0].mxu0
    %v462 = vadd.f32 %v260, %v461
    %v463 = vpop.f32.mrb[0].mxu0
    %v464 = vadd.f32 %v264, %v463
    %v465 = vpop.f32.mrb[0].mxu0
    %v466 = vadd.f32 %v260, %v465
    %v467 = vpop.f32.mrb[0].mxu0
    %v468 = vadd.f32 %v264, %v467
    %469 = vmatprep.mubr.bf16.mxu0 %v218
    %470 = vmatmul.mubr.bf16.gmra.mrb[0].mxu0 %v217
    %v471 = vpop.f32.mrb[0].mxu0
    %v472 = vadd.f32 %v260, %v471
    %v473 = vpop.f32.mrb[0].mxu0
    %v474 = vadd.f32 %v264, %v473
    %v475 = vpop.f32.mrb[0].mxu0
    %v476 = vadd.f32 %v260, %v475
    %v477 = vpop.f32.mrb[0].mxu0
    %v478 = vadd.f32 %v264, %v477
    %479 = vmatprep.mubr.bf16.mxu0 %v220
    %480 = vmatmul.mubr.bf16.gmra.mrb[0].mxu0 %v219
    %v481 = vpop.f32.mrb[0].mxu0
    %v482 = vadd.f32 %v260, %v481
    %v483 = vpop.f32.mrb[0].mxu0
    %v484 = vadd.f32 %v264, %v483
    %v485 = vpop.f32.mrb[0].mxu0
    %v486 = vadd.f32 %v260, %v485
    %v487 = vpop.f32.mrb[0].mxu0
    %v488 = vadd.f32 %v264, %v487
    %489 = vmatprep.mubr.bf16.mxu0 %v222
    %490 = vmatmul.mubr.bf16.gmra.mrb[0].mxu0 %v221
    %v491 = vpop.f32.mrb[0].mxu0
    %v492 = vadd.f32 %v260, %v491
    %v493 = vpop.f32.mrb[0].mxu0
    %v494 = vadd.f32 %v264, %v493
    %v495 = vpop.f32.mrb[0].mxu0
    %v496 = vadd.f32 %v260, %v495
    %v497 = vpop.f32.mrb[0].mxu0
    %v498 = vadd.f32 %v264, %v497
    %499 = vdwg.mxu0
    %v500 = vmax.f32 %v462, 0.0
    %v501 = vmax.f32 %v464, 0.0
    %v502 = vmax.f32 %v466, 0.0
    %v503 = vmax.f32 %v468, 0.0
    %v504 = vmax.f32 %v472, 0.0
    %v505 = vmax.f32 %v474, 0.0
    %v506 = vmax.f32 %v476, 0.0
    %v507 = vmax.f32 %v478, 0.0
    %v508 = vmax.f32 %v482, 0.0
    %v509 = vmax.f32 %v484, 0.0
    %v510 = vmax.f32 %v486, 0.0
    %v511 = vmax.f32 %v488, 0.0
    %v512 = vmax.f32 %v492, 0.0
    %v513 = vmax.f32 %v494, 0.0
    %v514 = vmax.f32 %v496, 0.0
    %v515 = vmax.f32 %v498, 0.0
    %v516 = vpack.c.bf16 %v502, %v500
    %v517 = vpack.c.bf16 %v503, %v501
    %v518 = vpack.c.bf16 %v506, %v504
    %v519 = vpack.c.bf16 %v507, %v505
    %v520 = vpack.c.bf16 %v510, %v508
    %v521 = vpack.c.bf16 %v511, %v509
    %v522 = vpack.c.bf16 %v514, %v512
    %v523 = vpack.c.bf16 %v515, %v513
    %v524 = vld [vmem:[#allocation4] sm:$0xf]
    %v525 = vld [vmem:[#allocation4 + $0x4] sm:$0xf]
    %v526 = vld [vmem:[#allocation4 + $0x8] sm:$0xf]
    %v527 = vld [vmem:[#allocation4 + $0xc] sm:$0xf]
    %v528 = vld [vmem:[#allocation4 + $0x10] sm:$0xf]
    %v529 = vld [vmem:[#allocation4 + $0x14] sm:$0xf]
    %v530 = vld [vmem:[#allocation4 + $0x18] sm:$0xf]
    %v531 = vld [vmem:[#allocation4 + $0x1c] sm:$0xf]
    %v532 = vld [vmem:[#allocation4 + $0x20] sm:$0xf]
    %v533 = vld [vmem:[#allocation4 + $0x24] sm:$0xf]
    %v534 = vld [vmem:[#allocation4 + $0x28] sm:$0xf]
    %v535 = vld [vmem:[#allocation4 + $0x2c] sm:$0xf]
    %v536 = vld [vmem:[#allocation4 + $0x30] sm:$0xf]
    %v537 = vld [vmem:[#allocation4 + $0x34] sm:$0xf]
    %v538 = vld [vmem:[#allocation4 + $0x38] sm:$0xf]
    %v539 = vld [vmem:[#allocation4 + $0x3c] sm:$0xf]
    %v540 = vld [vmem:[#allocation4 + $0x40] sm:$0xf]
    %v541 = vld [vmem:[#allocation4 + $0x44] sm:$0xf]
    %v542 = vld [vmem:[#allocation4 + $0x48] sm:$0xf]
    %v543 = vld [vmem:[#allocation4 + $0x4c] sm:$0xf]
    %v544 = vld [vmem:[#allocation4 + $0x50] sm:$0xf]
    %v545 = vld [vmem:[#allocation4 + $0x54] sm:$0xf]
    %v546 = vld [vmem:[#allocation4 + $0x58] sm:$0xf]
    %v547 = vld [vmem:[#allocation4 + $0x5c] sm:$0xf]
    %v548 = vld [vmem:[#allocation4 + $0x60] sm:$0xf]
    %v549 = vld [vmem:[#allocation4 + $0x64] sm:$0xf]
    %v550 = vld [vmem:[#allocation4 + $0x68] sm:$0xf]
    %v551 = vld [vmem:[#allocation4 + $0x6c] sm:$0xf]
    %v552 = vld [vmem:[#allocation4 + $0x70] sm:$0xf]
    %v553 = vld [vmem:[#allocation4 + $0x74] sm:$0xf]
    %v554 = vld [vmem:[#allocation4 + $0x78] sm:$0xf]
    %v555 = vld [vmem:[#allocation4 + $0x7c] sm:$0xf]
    %v556 = vld [vmem:[%s6] sm:$0x1]
    %v558 = vlaneseq
    %v559 = vshrl.u32 %v558, 7
    %v560 = vsub.s32 0, %v559
    %v561 = vrot.slane %v556, %v560
    %v595 = vunpack.c.l.b16 %v524
    %v596 = vunpack.c.l.b16 %v525
    %v597 = vunpack.c.l.b16 %v526
    %v598 = vunpack.c.l.b16 %v527
    %v599 = vunpack.c.l.b16 %v528
    %v600 = vunpack.c.l.b16 %v529
    %v601 = vunpack.c.l.b16 %v530
    %v602 = vunpack.c.l.b16 %v531
    %v603 = vunpack.c.l.b16 %v532
    %v604 = vunpack.c.l.b16 %v533
    %v605 = vunpack.c.l.b16 %v534
    %v606 = vunpack.c.l.b16 %v535
    %v607 = vunpack.c.l.b16 %v536
    %v608 = vunpack.c.l.b16 %v537
    %v609 = vunpack.c.l.b16 %v538
    %v610 = vunpack.c.l.b16 %v539
    %v611 = vunpack.c.l.b16 %v540
    %v612 = vunpack.c.l.b16 %v541
    %v613 = vunpack.c.l.b16 %v542
    %v614 = vunpack.c.l.b16 %v543
    %v615 = vunpack.c.l.b16 %v544
    %v616 = vunpack.c.l.b16 %v545
    %v617 = vunpack.c.l.b16 %v546
    %v618 = vunpack.c.l.b16 %v547
    %v619 = vunpack.c.l.b16 %v548
    %v620 = vunpack.c.l.b16 %v549
    %v621 = vunpack.c.l.b16 %v550
    %v622 = vunpack.c.l.b16 %v551
    %v623 = vunpack.c.l.b16 %v552
    %v624 = vunpack.c.l.b16 %v553
    %v625 = vunpack.c.l.b16 %v554
    %v626 = vunpack.c.l.b16 %v555
    %v627 = vpack.c.b16 %v596, %v595
    %v628 = vpack.c.b16 %v598, %v597
    %v629 = vpack.c.b16 %v600, %v599
    %v630 = vpack.c.b16 %v602, %v601
    %v631 = vpack.c.b16 %v604, %v603
    %v632 = vpack.c.b16 %v606, %v605
    %v633 = vpack.c.b16 %v608, %v607
    %v634 = vpack.c.b16 %v610, %v609
    %v635 = vpack.c.b16 %v612, %v611
    %v636 = vpack.c.b16 %v614, %v613
    %v637 = vpack.c.b16 %v616, %v615
    %v638 = vpack.c.b16 %v618, %v617
    %v639 = vpack.c.b16 %v620, %v619
    %v640 = vpack.c.b16 %v622, %v621
    %v641 = vpack.c.b16 %v624, %v623
    %v642 = vpack.c.b16 %v626, %v625
    %659 = vmatprep.subr.bf16.mxu0 0
    %660 = vmatpush1.bf16.msra.mxu0 %v627
    %661 = vmatprep.subr.bf16.mxu0 0
    %662 = vmatpush1.bf16.msra.mxu0 %v628
    %663 = vmatprep.subr.bf16.mxu0 0
    %664 = vmatpush1.bf16.msra.mxu0 %v629
    %665 = vmatprep.subr.bf16.mxu0 0
    %666 = vmatpush1.bf16.msra.mxu0 %v630
    %667 = vmatprep.subr.bf16.mxu0 0
    %668 = vmatpush1.bf16.msra.mxu0 %v631
    %669 = vmatprep.subr.bf16.mxu0 0
    %670 = vmatpush1.bf16.msra.mxu0 %v632
    %671 = vmatprep.subr.bf16.mxu0 0
    %672 = vmatpush1.bf16.msra.mxu0 %v633
    %673 = vmatprep.subr.bf16.mxu0 0
    %674 = vmatpush1.bf16.msra.mxu0 %v634
    %675 = vmatprep.subr.bf16.mxu0 0
    %676 = vmatpush1.bf16.msra.mxu0 %v635
    %677 = vmatprep.subr.bf16.mxu0 0
    %678 = vmatpush1.bf16.msra.mxu0 %v636
    %679 = vmatprep.subr.bf16.mxu0 0
    %680 = vmatpush1.bf16.msra.mxu0 %v637
    %681 = vmatprep.subr.bf16.mxu0 0
    %682 = vmatpush1.bf16.msra.mxu0 %v638
    %683 = vmatprep.subr.bf16.mxu0 0
    %684 = vmatpush1.bf16.msra.mxu0 %v639
    %685 = vmatprep.subr.bf16.mxu0 0
    %686 = vmatpush1.bf16.msra.mxu0 %v640
    %687 = vmatprep.subr.bf16.mxu0 0
    %688 = vmatpush1.bf16.msra.mxu0 %v641
    %689 = vmatprep.subr.bf16.mxu0 0
    %690 = vmatpush1.bf16.msra.mxu0 %v642
    %691 = vmatprep.mubr.bf16.mxu0 %v517
    %692 = vmatmul.mubr.bf16.gmra.mrb[0].mxu0 %v516
    %v693 = vpop.f32.mrb[0].mxu0
    %v694 = vadd.f32 %v561, %v693
    %v695 = vpop.f32.mrb[0].mxu0
    %v696 = vpop.f32.mrb[0].mxu0
    %v697 = vadd.f32 %v561, %v696
    %v698 = vpop.f32.mrb[0].mxu0
    %699 = vmatprep.mubr.bf16.mxu0 %v519
    %700 = vmatmul.mubr.bf16.gmra.mrb[0].mxu0 %v518
    %v701 = vpop.f32.mrb[0].mxu0
    %v702 = vadd.f32 %v561, %v701
    %v703 = vpop.f32.mrb[0].mxu0
    %v704 = vpop.f32.mrb[0].mxu0
    %v705 = vadd.f32 %v561, %v704
    %v706 = vpop.f32.mrb[0].mxu0
    %707 = vmatprep.mubr.bf16.mxu0 %v521
    %708 = vmatmul.mubr.bf16.gmra.mrb[0].mxu0 %v520
    %v709 = vpop.f32.mrb[0].mxu0
    %v710 = vadd.f32 %v561, %v709
    %v711 = vpop.f32.mrb[0].mxu0
    %v712 = vpop.f32.mrb[0].mxu0
    %v713 = vadd.f32 %v561, %v712
    %v714 = vpop.f32.mrb[0].mxu0
    %715 = vmatprep.mubr.bf16.mxu0 %v523
    %716 = vmatmul.mubr.bf16.gmra.mrb[0].mxu0 %v522
    %v717 = vpop.f32.mrb[0].mxu0
    %v718 = vadd.f32 %v561, %v717
    %v719 = vpop.f32.mrb[0].mxu0
    %v720 = vpop.f32.mrb[0].mxu0
    %v721 = vadd.f32 %v561, %v720
    %v722 = vpop.f32.mrb[0].mxu0
    %723 = vdwg.mxu0
    %v724 = vmax.f32 %v694, 0.0
    %v725 = vmax.f32 %v697, 0.0
    %v726 = vmax.f32 %v702, 0.0
    %v727 = vmax.f32 %v705, 0.0
    %v728 = vmax.f32 %v710, 0.0
    %v729 = vmax.f32 %v713, 0.0
    %v730 = vmax.f32 %v718, 0.0
    %v731 = vmax.f32 %v721, 0.0
    %v732 = vpack.c.bf16 %v725, %v724
    %v733 = vpack.c.bf16 %v727, %v726
    %v734 = vpack.c.bf16 %v729, %v728
    %v735 = vpack.c.bf16 %v731, %v730
    %v736 = vld [vmem:[%s7] sm:$0xf]
    %v737 = vld [vmem:[%s7 + $0x4] sm:$0xf]
    %v738 = vld [vmem:[%s7 + $0x8] sm:$0xf]
    %v739 = vld [vmem:[%s7 + $0xc] sm:$0xf]
    %v740 = vld [vmem:[%s7 + $0x10] sm:$0xf]
    %v741 = vld [vmem:[%s7 + $0x14] sm:$0xf]
    %v742 = vld [vmem:[%s7 + $0x18] sm:$0xf]
    %v743 = vld [vmem:[%s7 + $0x1c] sm:$0xf]
    %v744 = vld [vmem:[%s7 + $0x20] sm:$0xf]
    %v745 = vld [vmem:[%s7 + $0x24] sm:$0xf]
    %v746 = vld [vmem:[%s7 + $0x28] sm:$0xf]
    %v747 = vld [vmem:[%s7 + $0x2c] sm:$0xf]
    %v748 = vld [vmem:[%s7 + $0x30] sm:$0xf]
    %v749 = vld [vmem:[%s7 + $0x34] sm:$0xf]
    %v750 = vld [vmem:[%s7 + $0x38] sm:$0xf]
    %v751 = vld [vmem:[%s7 + $0x3c] sm:$0xf]
    %v752 = vld [vmem:[%s8] sm:$0x1]
    %v754 = vlaneseq
    %v755 = vshrl.u32 %v754, 7
    %v756 = vsub.s32 0, %v755
    %v757 = vrot.slane %v752, %v756
    %v775 = vunpack.c.l.b16 %v736
    %v776 = vunpack.c.l.b16 %v737
    %v777 = vunpack.c.l.b16 %v738
    %v778 = vunpack.c.l.b16 %v739
    %v779 = vunpack.c.l.b16 %v740
    %v780 = vunpack.c.l.b16 %v741
    %v781 = vunpack.c.l.b16 %v742
    %v782 = vunpack.c.l.b16 %v743
    %v783 = vunpack.c.l.b16 %v744
    %v784 = vunpack.c.l.b16 %v745
    %v785 = vunpack.c.l.b16 %v746
    %v786 = vunpack.c.l.b16 %v747
    %v787 = vunpack.c.l.b16 %v748
    %v788 = vunpack.c.l.b16 %v749
    %v789 = vunpack.c.l.b16 %v750
    %v790 = vunpack.c.l.b16 %v751
    %v791 = vpack.c.b16 %v776, %v775
    %v792 = vpack.c.b16 %v778, %v777
    %v793 = vpack.c.b16 %v780, %v779
    %v794 = vpack.c.b16 %v782, %v781
    %v795 = vpack.c.b16 %v784, %v783
    %v796 = vpack.c.b16 %v786, %v785
    %v797 = vpack.c.b16 %v788, %v787
    %v798 = vpack.c.b16 %v790, %v789
    %807 = vmatprep.subr.bf16.mxu0 0
    %808 = vmatpush1.bf16.msra.mxu0 %v791
    %809 = vmatprep.subr.bf16.mxu0 0
    %810 = vmatpush1.bf16.msra.mxu0 %v792
    %811 = vmatprep.subr.bf16.mxu0 0
    %812 = vmatpush1.bf16.msra.mxu0 %v793
    %813 = vmatprep.subr.bf16.mxu0 0
    %814 = vmatpush1.bf16.msra.mxu0 %v794
    %815 = vmatprep.subr.bf16.mxu0 0
    %816 = vmatpush1.bf16.msra.mxu0 %v795
    %817 = vmatprep.subr.bf16.mxu0 0
    %818 = vmatpush1.bf16.msra.mxu0 %v796
    %819 = vmatprep.subr.bf16.mxu0 0
    %820 = vmatpush1.bf16.msra.mxu0 %v797
    %821 = vmatprep.subr.bf16.mxu0 0
    %822 = vmatpush1.bf16.msra.mxu0 %v798
    %823 = vmatprep.subr.bf16.mxu0 0
    %824 = vmatpush1.bf16.msra.mxu0 0
    %825 = vmatprep.subr.bf16.mxu0 0
    %826 = vmatpush1.bf16.msra.mxu0 0
    %827 = vmatprep.subr.bf16.mxu0 0
    %828 = vmatpush1.bf16.msra.mxu0 0
    %829 = vmatprep.subr.bf16.mxu0 0
    %830 = vmatpush1.bf16.msra.mxu0 0
    %831 = vmatprep.subr.bf16.mxu0 0
    %832 = vmatpush1.bf16.msra.mxu0 0
    %833 = vmatprep.subr.bf16.mxu0 0
    %834 = vmatpush1.bf16.msra.mxu0 0
    %835 = vmatprep.subr.bf16.mxu0 0
    %836 = vmatpush1.bf16.msra.mxu0 0
    %837 = vmatprep.subr.bf16.mxu0 0
    %838 = vmatpush1.bf16.msra.mxu0 0
    %839 = vmatprep.mubr.bf16.mxu0 0
    %840 = vmatmul.mubr.bf16.gmra.mrb[0].mxu0 %v732
    %v841 = vpop.f32.mrb[0].mxu0
    %v842 = vadd.f32 %v757, %v841
    %v843 = vpop.f32.mrb[0].mxu0
    %v844 = vpop.f32.mrb[0].mxu0
    %v845 = vadd.f32 %v757, %v844
    %v846 = vpop.f32.mrb[0].mxu0
    %847 = vmatprep.mubr.bf16.mxu0 0
    %848 = vmatmul.mubr.bf16.gmra.mrb[0].mxu0 %v733
    %v849 = vpop.f32.mrb[0].mxu0
    %v850 = vadd.f32 %v757, %v849
    %v851 = vpop.f32.mrb[0].mxu0
    %v852 = vpop.f32.mrb[0].mxu0
    %v853 = vadd.f32 %v757, %v852
    %v854 = vpop.f32.mrb[0].mxu0
    %855 = vmatprep.mubr.bf16.mxu0 0
    %856 = vmatmul.mubr.bf16.gmra.mrb[0].mxu0 %v734
    %v857 = vpop.f32.mrb[0].mxu0
    %v858 = vadd.f32 %v757, %v857
    %v859 = vpop.f32.mrb[0].mxu0
    %v860 = vpop.f32.mrb[0].mxu0
    %v861 = vadd.f32 %v757, %v860
    %v862 = vpop.f32.mrb[0].mxu0
    %863 = vmatprep.mubr.bf16.mxu0 0
    %864 = vmatmul.mubr.bf16.gmra.mrb[0].mxu0 %v735
    %v865 = vpop.f32.mrb[0].mxu0
    %v866 = vadd.f32 %v757, %v865
    %v867 = vpop.f32.mrb[0].mxu0
    %v868 = vpop.f32.mrb[0].mxu0
    %v869 = vadd.f32 %v757, %v868
    %v870 = vpop.f32.mrb[0].mxu0
    %871 = vdwg.mxu0
    %872 = vst [vmem:[%s9] sm:$0xff] %v842
    %873 = vst [vmem:[%s9 + $0x8] sm:$0xff] %v845
    %874 = vst [vmem:[%s9 + $0x10] sm:$0xff] %v850
    %875 = vst [vmem:[%s9 + $0x18] sm:$0xff] %v853
    %876 = vst [vmem:[%s9 + $0x20] sm:$0xff] %v858
    %877 = vst [vmem:[%s9 + $0x28] sm:$0xff] %v861
    %878 = vst [vmem:[%s9 + $0x30] sm:$0xff] %v866
    %879 = vst [vmem:[%s9 + $0x38] sm:$0xff] %v869
    // Predicated region
    $region46: #{_dqn_forward_jit.1} parent=1 // pred_check
      _
    $region47: #{_dqn_forward_jit.1} parent=1 // pred_check_branch
      %881 = sbr.rel (0) target = $region49
    $region48: #{_dqn_forward_jit.1} parent=1 // pred_region
      _
    $region49: #{_dqn_forward_jit.1} parent=1 // pred_fallthru
      _
    // Predicated region
    $region50: #{_dqn_forward_jit.1} parent=1 // pred_check
      _
    $region51: #{_dqn_forward_jit.1} parent=1 // pred_check_branch
      %883 = sbr.rel (0) target = $region53
    $region52: #{_dqn_forward_jit.1} parent=1 // pred_region
      _
    $region53: #{_dqn_forward_jit.1} parent=1 // pred_fallthru
      _
    %884 = vsyncpa [#allocation3], 1
    %885 = vsyncpa [#allocation5], 1

</llo_original>
